<compile_context>
chip_gen: v7x
topology: tpu7x:2x2x1
jax: 0.10.0
libtpu: 0.0.40
codegen_flags: <defaults>
</compile_context>

<pallas_src>
import jax
import jax.numpy as jnp
from jax.experimental import pallas as pl
from jax.experimental.pallas import tpu as pltpu

_LANE = 128
_SUBLANE = 8
_MIN_BLOCK_BYTES = 256 * 1024   # keep per-operand DMAs >= ~256 KiB (v5e single stream)


def _round_up(x, m):
    return ((x + m - 1) // m) * m


def _round_down(x, m):
    return (x // m) * m


def _vmem_budgets():
    """Generation-aware (block_budget_bytes, vmem_limit_bytes)."""
    try:
        info = pltpu.get_tpu_info()
        vmem = int(getattr(info, "vmem_capacity_bytes", 64 * 1024 * 1024))
    except Exception:
        vmem = 64 * 1024 * 1024          # conservative (v7x-sized) default
    if vmem >= 96 * 1024 * 1024:         # v5e / v6e: 128 MiB physical VMEM
        return 40 * 1024 * 1024, 96 * 1024 * 1024
    return 20 * 1024 * 1024, 48 * 1024 * 1024   # v7x: 64 MiB physical VMEM


def _add_kernel(x_ref, e_ref, o_ref):
    # Cast in-kernel (no separate XLA cast pass) and add in the output dtype so
    # bf16 activations + f32 embed match PyTorch promotion when promoting.
    o_ref[...] = x_ref[...].astype(o_ref.dtype) + e_ref[...].astype(o_ref.dtype)


def _add_3d(x3, e3, out_dtype, block_budget, vmem_limit):
    """out[b, s, d] = x3[b, s, d] + e3[0, s, d] for a (B, S, D) view."""
    B, S, D = x3.shape
    M = e3.shape[1]
    xb = x3.dtype.itemsize
    eb = e3.dtype.itemsize
    ob = jnp.dtype(out_dtype).itemsize

    cost = pl.CostEstimate(
        flops=int(x3.size), transcendentals=0,
        bytes_accessed=int(x3.size) * xb + S * D * eb + int(x3.size) * ob)

    # Double-buffered bytes for one sequence row at b_blk = 1.
    row_bytes = 2 * D * (xb + eb + ob)
    ts_budget = max(_SUBLANE, _round_down(block_budget // row_bytes, _SUBLANE))

    if ts_budget >= S:
        # Whole sequence fits one tile: fold batch rows into the block so large
        # B doesn't pay per-row grid-step overhead, and the embed tile (block
        # index constant across all steps) is DMA'd once per core.
        if S % _SUBLANE != 0 and S != M:
            # A (1, S, D) embed block is only legal if S % 8 == 0 or S equals
            # embed's full length; pre-slice the tiny prefix so it does.
            e3 = e3[:, :S, :]
            M = S
        bytes_per_batch_row = 2 * S * D * (xb + ob)
        b_blk = max(1, (block_budget - 2 * S * D * eb) // max(1, bytes_per_batch_row))
        b_blk = min(b_blk, B)
        # Give the sharded axis >= 2 (ideally 4) blocks for v7x's two
        # TensorCores, but never at the cost of sub-256 KiB DMAs.
        for nblk in (4, 2):
            cand = pl.cdiv(B, nblk)
            if cand * S * D * xb >= _MIN_BLOCK_BYTES:
                b_blk = min(b_blk, cand)
                break
        return pl.pallas_call(
            _add_kernel,
            out_shape=jax.ShapeDtypeStruct((B, S, D), out_dtype),
            grid_spec=pltpu.PrefetchScalarGridSpec(
                num_scalar_prefetch=0,
                grid=(pl.cdiv(B, b_blk),),
                in_specs=[
                    pl.BlockSpec((b_blk, S, D), lambda b: (b, 0, 0)),
                    pl.BlockSpec((1, S, D), lambda b: (0, 0, 0)),
                ],
                out_specs=pl.BlockSpec((b_blk, S, D), lambda b: (b, 0, 0)),
            ),
            compiler_params=pltpu.CompilerParams(
                dimension_semantics=("parallel",),
                vmem_limit_bytes=vmem_limit,
            ),
            cost_estimate=cost,
        )(x3, e3)

    # Sequence does not fit one tile: tile the sequence axis (multiple of 8,
    # strictly < S so the parallel axis has >= 2 blocks), batch innermost so the
    # embed tile is reused across consecutive steps instead of re-DMA'd.
    ts = ts_budget
    return pl.pallas_call(
        _add_kernel,
        out_shape=jax.ShapeDtypeStruct((B, S, D), out_dtype),
        grid_spec=pltpu.PrefetchScalarGridSpec(
            num_scalar_prefetch=0,
            grid=(pl.cdiv(S, ts), B),                 # batch innermost
            in_specs=[
                pl.BlockSpec((1, ts, D), lambda s, b: (b, s, 0)),
                # embed prefix selected purely by the index_map (no pre-slice).
                pl.BlockSpec((1, ts, D), lambda s, b: (0, s, 0)),
            ],
            out_specs=pl.BlockSpec((1, ts, D), lambda s, b: (b, s, 0)),
        ),
        compiler_params=pltpu.CompilerParams(
            # Sequence axis sharded across v7x's 2 TCs (embed read once per
            # core); batch axis is the sequential embed-reuse axis.
            dimension_semantics=("parallel", "arbitrary"),
            vmem_limit_bytes=vmem_limit,
        ),
        cost_estimate=cost,
    )(x3, e3)


def positional_embedding(x, embed, *, out_dtype=None, min_pallas_bytes=1 << 20,
                         block_budget_bytes=None):
    """Pallas TPU equivalent of PositionalEmbedding.forward: x + embed[:, :S].

    x:     (B, S, D)              activations
    embed: (1, max_positions, D)  learned table, S <= max_positions
    out_dtype: optional override (e.g. keep bf16 output to halve HBM write traffic).
    """
    B, S, D = x.shape
    _, max_positions, d_embed = embed.shape
    assert d_embed == D, f"dim mismatch: x D={D} vs embed D={d_embed}"
    assert S <= max_positions, f"seq len {S} exceeds max_positions {max_positions}"

    if out_dtype is None:
        out_dtype = jnp.promote_types(x.dtype, embed.dtype)
    out_dtype = jnp.dtype(out_dtype)

    # Tiny inputs: custom-call dispatch + grid-step overhead dwarfs a few KiB of
    # HBM traffic; let XLA fuse the broadcast add with its neighbours.
    if x.size * x.dtype.itemsize < min_pallas_bytes:
        return x.astype(out_dtype) + embed[:, :S, :].astype(out_dtype)

    block_budget, vmem_limit = _vmem_budgets()
    if block_budget_bytes is not None:
        block_budget = block_budget_bytes

    # Lane-aligned feature dim: straight (B, S, D) tiling.
    if D % _LANE == 0:
        return _add_3d(x, embed, out_dtype, block_budget, vmem_limit)

    flat_ok = (S * D) % _LANE == 0 and (max_positions * D) % _LANE == 0
    rows = (S * D) // _LANE if flat_ok else 0

    if flat_ok and rows % _SUBLANE == 0:
        # Lane-dense (B, rows, 128) view: full (8,128) tile density regardless
        # of B (no sublane padding for small batches); reuse the 3-D machinery.
        x3 = x.reshape(B, rows, _LANE)
        e3 = embed.reshape(1, (max_positions * D) // _LANE, _LANE)
        out = _add_3d(x3, e3, out_dtype, block_budget, vmem_limit)
        return out.reshape(B, S, D)

    if flat_ok:
        # rows not a multiple of 8 (e.g. tiny S*D): 2-D (B, S*D) flatten so
        # stores are still unmasked full-width vst.
        xb, eb, ob = x.dtype.itemsize, embed.dtype.itemsize, out_dtype.itemsize
        n = S * D
        per_chunk_at_min = 2 * _LANE * (B * xb + eb + B * ob)
        if per_chunk_at_min <= block_budget:   # guard: huge B can't fit a (B, 128) block
            x2 = x.reshape(B, n)
            e2 = embed.reshape(1, max_positions * D)
            chunk = block_budget // (2 * (B * xb + eb + B * ob))
            chunk = max(_LANE, _round_down(chunk, _LANE))
            chunk = min(chunk, _round_up(n, _LANE))
            # >= 4 chunks for v7x 2-TC sharding, if that keeps DMAs >= ~256 KiB.
            chunk4 = _round_up(pl.cdiv(n, 4), _LANE)
            if chunk4 * B * xb >= _MIN_BLOCK_BYTES:
                chunk = min(chunk, chunk4)
            cost = pl.CostEstimate(
                flops=int(x.size), transcendentals=0,
                bytes_accessed=int(x.size) * xb + n * eb + int(x.size) * ob)
            out = pl.pallas_call(
                _add_kernel,
                out_shape=jax.ShapeDtypeStruct((B, n), out_dtype),
                grid_spec=pltpu.PrefetchScalarGridSpec(
                    num_scalar_prefetch=0,
                    grid=(pl.cdiv(n, chunk),),
                    in_specs=[
                        pl.BlockSpec((B, chunk), lambda c: (0, c)),   # x: all batches, one chunk
                        pl.BlockSpec((1, chunk), lambda c: (0, c)),   # embed prefix via index_map
                    ],
                    out_specs=pl.BlockSpec((B, chunk), lambda c: (0, c)),
                ),
                compiler_params=pltpu.CompilerParams(
                    dimension_semantics=("parallel",),
                    vmem_limit_bytes=vmem_limit,
                ),
                cost_estimate=cost,
            )(x2, e2)
            return out.reshape(B, S, D)

    # TODO(synk): for large tensors with D % 128 != 0 and no legal flatten, padding D
    # up to 128 in the wrapper would remove masked partial stores at the cost of an
    # extra copy; for now fall through to the (correct) masked-store 3-D path.
    return _add_3d(x, embed, out_dtype, block_budget, vmem_limit)


if __name__ == "__main__":
    MAX_POSITIONS = 200
    key = jax.random.PRNGKey(0)
    keys = jax.random.split(key, 10)

    def check(x, embed, **kw):
        out = jax.block_until_ready(
            positional_embedding(x, embed, min_pallas_bytes=0, **kw))
        ref = x + embed[:, :x.shape[1], :]
        assert out.shape == ref.shape and out.dtype == ref.dtype
        assert jnp.allclose(out, ref, atol=1e-6)

    # 1) Module's natural small shapes (B=2, S=8, D=32): 2-D lane-dense flatten path.
    x = jax.random.normal(keys[0], (2, 8, 32), dtype=jnp.float32)
    e = jax.random.normal(keys[1], (1, MAX_POSITIONS, 32), dtype=jnp.float32)
    check(x, e)

    # 2) Lane-aligned D: general path, batch-folded (whole sequence in one tile).
    x = jax.random.normal(keys[2], (2, 16, 128), dtype=jnp.float32)
    e = jax.random.normal(keys[3], (1, MAX_POSITIONS, 128), dtype=jnp.float32)
    check(x, e)

    # 3) D=32 with S*D % (8*128) == 0: lane-dense (B, rows, 128) view path.
    x = jax.random.normal(keys[4], (2, 32, 32), dtype=jnp.float32)
    e = jax.random.normal(keys[5], (1, MAX_POSITIONS, 32), dtype=jnp.float32)
    check(x, e)

    # 4) Tiled-sequence path (force small block budget so ts < S): grid (4, 2).
    x = jax.random.normal(keys[6], (2, 64, 128), dtype=jnp.float32)
    e = jax.random.normal(keys[7], (1, MAX_POSITIONS, 128), dtype=jnp.float32)
    check(x, e, block_budget_bytes=2 * 128 * 12 * 16)

    # 5) Non-multiple-of-8 sequence length (S=12): fold path with embed prefix slice.
    x = jax.random.normal(keys[8], (2, 12, 128), dtype=jnp.float32)
    e = jax.random.normal(keys[9], (1, MAX_POSITIONS, 128), dtype=jnp.float32)
    check(x, e)

    print("KERNEL_OK")
</pallas_src>

<mosaic_0001>
module attributes {stable_mosaic.version = 11 : i64} {
  func.func @_add_kernel(%arg0: i32, %arg1: memref<2x256xf32, #tpu.memory_space<vmem>>, %arg2: memref<1x256xf32, #tpu.memory_space<vmem>>, %arg3: memref<2x256xf32, #tpu.memory_space<vmem>>) attributes {dimension_semantics = [#tpu.dimension_semantics<parallel>], iteration_bounds = array<i64: 1>, scalar_prefetch = 0 : i64, scratch_operands = 0 : i64, tpu.core_type = #tpu.core_type<tc>, window_params = [{transform_indices = @transform_0, window_bounds = array<i64: 2, 256>}, {transform_indices = @transform_1, window_bounds = array<i64: 1, 256>}, {transform_indices = @transform_2, window_bounds = array<i64: 2, 256>}]} {
    %c0 = arith.constant 0 : index
    %c0_0 = arith.constant 0 : index
    %0 = vector.load %arg1[%c0, %c0_0] : memref<2x256xf32, #tpu.memory_space<vmem>>, vector<2x256xf32>
    %c0_1 = arith.constant 0 : index
    %c0_2 = arith.constant 0 : index
    %1 = vector.load %arg2[%c0_1, %c0_2] : memref<1x256xf32, #tpu.memory_space<vmem>>, vector<1x256xf32>
    %2 = vector.broadcast %1 : vector<1x256xf32> to vector<2x256xf32>
    %3 = arith.addf %0, %2 : vector<2x256xf32>
    %c0_3 = arith.constant 0 : index
    %c0_4 = arith.constant 0 : index
    %4 = vector.load %arg3[%c0_3, %c0_4] : memref<2x256xf32, #tpu.memory_space<vmem>>, vector<2x256xf32>
    tpu.vector_store %arg3[%c0_3, %c0_4], %3 {strides = array<i32>} : memref<2x256xf32, #tpu.memory_space<vmem>>, vector<2x256xf32>,
    return
  }
  func.func @transform_0(%arg0: i32) -> (i32, i32) {
    %c0_i32 = arith.constant 0 : i32
    %c0_i32_0 = arith.constant 0 : i32
    return %c0_i32, %arg0 : i32, i32
  }
  func.func @transform_1(%arg0: i32) -> (i32, i32) {
    %c0_i32 = arith.constant 0 : i32
    %c0_i32_0 = arith.constant 0 : i32
    return %c0_i32, %arg0 : i32, i32
  }
  func.func @transform_2(%arg0: i32) -> (i32, i32) {
    %c0_i32 = arith.constant 0 : i32
    %c0_i32_0 = arith.constant 0 : i32
    return %c0_i32, %arg0 : i32, i32
  }
}

</mosaic_0001>

<llo_original>
// kernel: tpu_custom_call.1
$region0: #{tpu_custom_call.1}
  #allocation0 [shape = 'u32[]', space=smem, size = 0x4, offset = 0x4, fixed_abs, tag = 'smem constant byte address 0x4 - core index']
  #allocation1 [shape = 'u32[144,128]{1,0:T(1,128)}', space=vmem, size = 0x12000, scoped, tag = 'internal scratch']
  %s0 = inlined_call_operand.hbm [shape: f32[2,256], index: 0, kind: input, shape index: {}]
  %s1 = inlined_call_operand.hbm [shape: f32[1,6400], index: 1, kind: input, shape index: {}]
  %s2 = inlined_call_operand.hbm [shape: f32[2,256], index: 2, kind: output, shape index: {}]
  %s3 = sld [smem:[#allocation0]]
  $region26: #{tpu_custom_call.1} parent=0
    _
  %s5 = ssub.s32 1, %s3
  %s6 = scalar_select 0, %s5, %s3
  $region1: #{tpu_custom_call.1} parent=0
    #allocation2 [shape = 'u8[2048]{0}', space=vmem, size = 0x800, scoped, tag = 'input window, operand 0, single buffered']
    #allocation3 [shape = 's32[1]{0}', space=sflag, size = 0x4, scoped, tag = 'scoped memory for tpu_custom_call.1']
    #allocation4 [shape = 's32[1]{0}', space=sflag, size = 0x4, scoped, tag = 'scoped memory for tpu_custom_call.1']
    #allocation5 [shape = 'u8[1024]{0}', space=vmem, size = 0x400, scoped, tag = 'input window, operand 1, single buffered']
    #allocation6 [shape = 's32[1]{0}', space=sflag, size = 0x4, scoped, tag = 'scoped memory for tpu_custom_call.1']
    #allocation7 [shape = 'u8[2048]{0}', space=vmem, size = 0x800, scoped, tag = 'output window, operand 0, single buffered']
    %7 = vsyncpa [#allocation3], 0
    %8 = vsyncpa [#allocation6], 0
    %9 = vsyncpa [#allocation4], 0
    // Predicated region
    $region2: #{tpu_custom_call.1} parent=1 // pred_check
      _
    $region3: #{tpu_custom_call.1} parent=1 // pred_check_branch
      %11 = sbr.rel (0) target = $region5
    $region4: #{tpu_custom_call.1} parent=1 // pred_region
      %s13 = ssub.s32 64, 64
      %14 = vsyncadd [#allocation3], %s13
      %s16 = sshll.u32 [#allocation2], 4
      %s17 = int_to_ptr.vmem [resolvable:$true] %s16
      %19 = dma.hbm_to_vmem [thread:$0]  %s0, 64, %s17, [#allocation3]
    $region5: #{tpu_custom_call.1} parent=1 // pred_fallthru
      _
    // Predicated region
    $region6: #{tpu_custom_call.1} parent=1 // pred_check
      _
    $region7: #{tpu_custom_call.1} parent=1 // pred_check_branch
      %21 = sbr.rel (0) target = $region9
    $region8: #{tpu_custom_call.1} parent=1 // pred_region
      %s23 = ssub.s32 32, 32
      %24 = vsyncadd [#allocation6], %s23
      %s26 = sshll.u32 [#allocation5], 4
      %s27 = int_to_ptr.vmem [resolvable:$true] %s26
      %29 = dma.hbm_to_vmem [thread:$0]  %s1, 32, %s27, [#allocation6]
    $region9: #{tpu_custom_call.1} parent=1 // pred_fallthru
      _
    // Predicated region
    $region10: #{tpu_custom_call.1} parent=1 // pred_check
      _
    $region11: #{tpu_custom_call.1} parent=1 // pred_check_branch
      %31 = sbr.rel (0) target = $region13
    $region12: #{tpu_custom_call.1} parent=1 // pred_region
      %32 = dma.done [#allocation3], 64
    $region13: #{tpu_custom_call.1} parent=1 // pred_fallthru
      _
    // Predicated region
    $region14: #{tpu_custom_call.1} parent=1 // pred_check
      _
    $region15: #{tpu_custom_call.1} parent=1 // pred_check_branch
      %34 = sbr.rel (0) target = $region17
    $region16: #{tpu_custom_call.1} parent=1 // pred_region
      %35 = dma.done [#allocation6], 32
    $region17: #{tpu_custom_call.1} parent=1 // pred_fallthru
      _
    %v36 = vld [vmem:[#allocation2] sm:$0xf]
    %v37 = vld [vmem:[#allocation5] sm:$0x3]
    %v39 = vlaneseq
    %v40 = vshrl.u32 %v39, 7
    %v41 = vsub.s32 0, %v40
    %v42 = vrot.slane %v37, %v41
    %v43 = vlaneseq
    %v44 = vshrl.u32 %v43, 7
    %v45 = vsub.s32 1, %v44
    %v46 = vrot.slane %v37, %v45
    %v47 = vcombine.low %v42, %v46
    %v49 = vunpack.c.l.s4 1983009808
    %v50 = vunpack.c.0.s8 %v49
    %v51 = vlaneseq
    %v52 = vshrl.u32 %v51, 7
    %v53 = vsub.s32 %v50, %v52
    %v54 = vrot.slane %v47, %v53
    %v56 = vadd.f32 %v36, %v54
    %57 = vst [vmem:[#allocation7] sm:$0xf] %v56
    // Predicated region
    $region18: #{tpu_custom_call.1} parent=1 // pred_check
      _
    $region19: #{tpu_custom_call.1} parent=1 // pred_check_branch
      %59 = sbr.rel (0) target = $region21
    $region20: #{tpu_custom_call.1} parent=1 // pred_region
      %s61 = ssub.s32 64, 64
      %62 = vsyncadd [#allocation4], %s61
      %s64 = sshll.u32 [#allocation7], 4
      %s65 = int_to_ptr.vmem [resolvable:$true] %s64
      %67 = dma.vmem_to_hbm [thread:$0]  %s65, 64, %s2, [#allocation4]
    $region21: #{tpu_custom_call.1} parent=1 // pred_fallthru
      _
    // Predicated region
    $region22: #{tpu_custom_call.1} parent=1 // pred_check
      _
    $region23: #{tpu_custom_call.1} parent=1 // pred_check_branch
      %69 = sbr.rel (0) target = $region25
    $region24: #{tpu_custom_call.1} parent=1 // pred_region
      %70 = dma.done [#allocation4], 64
    $region25: #{tpu_custom_call.1} parent=1 // pred_fallthru
      _
    %71 = vsyncpa [#allocation3], 1
    %72 = vsyncpa [#allocation6], 1
    %73 = vsyncpa [#allocation4], 1

</llo_original>
